<compile_context>
chip_gen: v7x
topology: tpu7x:2x2x1
jax: 0.10.0
libtpu: 0.0.40
codegen_flags: <defaults>
</compile_context>

<pallas_src>
import math

import jax
import jax.numpy as jnp
from jax.experimental import pallas as pl
from jax.experimental.pallas import tpu as pltpu


def _round_up(x, m):
    return ((x + m - 1) // m) * m


def _complex_mask_kernel(sn_ref, un_ref, out_ref):
    # Refs are (2, tile_rows, cols): plane 0 = real, plane 1 = imag.
    sn_re = sn_ref[0]
    sn_im = sn_ref[1]
    un_re = un_ref[0]
    un_im = un_ref[1]

    # |u|^2, guarded so rsqrt stays finite for u == 0 (incl. padded cells).
    m2 = un_re * un_re + un_im * un_im
    safe_m2 = jnp.where(m2 > 0.0, m2, 1.0)
    inv_mag = jax.lax.rsqrt(safe_m2)          # 1/|u|           (EUP)
    mag_u = m2 * inv_mag                      # |u|
    factor = jnp.tanh(mag_u) * inv_mag        # tanh(|u|)/|u|; == 0 when u == 0

    # factor * (u * s)  -- complex multiply on the VPU.
    out_ref[0] = factor * (un_re * sn_re - un_im * sn_im)
    out_ref[1] = factor * (un_re * sn_im + un_im * sn_re)


def complex_mask_on_polar_coo(sound_with_noise, unet_out,
                              *, cols=512, max_tile_rows=512):
    """sound_with_noise, unet_out: float arrays of shape [..., 2]."""
    assert sound_with_noise.shape == unet_out.shape
    assert sound_with_noise.shape[-1] == 2

    orig_shape = sound_with_noise.shape
    orig_dtype = sound_with_noise.dtype
    lead = orig_shape[:-1]
    n = math.prod(lead)

    # Lane-dense flattening: cols is a multiple of 128; rows padded to a
    # multiple of the tile height so the grid divides evenly.
    rows_needed = -(-n // cols)
    tile_rows = min(max_tile_rows, _round_up(rows_needed, 8))
    rows = _round_up(rows_needed, tile_rows)
    n_pad = rows * cols

    def to_planes(x):
        flat = x.reshape(n, 2).astype(jnp.float32)
        planes = flat.T                                   # (2, n): re / im planes
        planes = jnp.pad(planes, ((0, 0), (0, n_pad - n)))
        return planes.reshape(2, rows, cols)

    sn = to_planes(sound_with_noise)
    un = to_planes(unet_out)

    block = (2, tile_rows, cols)
    spec = pl.BlockSpec(block, lambda i: (0, i, 0))

    out = pl.pallas_call(
        _complex_mask_kernel,
        out_shape=jax.ShapeDtypeStruct((2, rows, cols), jnp.float32),
        grid=(rows // tile_rows,),
        in_specs=[spec, spec],
        out_specs=spec,
        compiler_params=pltpu.CompilerParams(
            dimension_semantics=("parallel",)),   # shard rows across v7x cores
    )(sn, un)

    out = out.reshape(2, n_pad)[:, :n].T          # (n, 2) re/im interleaved
    return out.reshape(orig_shape).astype(orig_dtype)


def _reference(sound_with_noise, unet_out):
    un_re, un_im = unet_out[..., 0], unet_out[..., 1]
    sn_re, sn_im = sound_with_noise[..., 0], sound_with_noise[..., 1]
    mag_mask = jnp.sqrt(un_re ** 2 + un_im ** 2)
    phase_mask = jnp.arctan2(un_im, un_re)
    mag_in = jnp.sqrt(sn_re ** 2 + sn_im ** 2)
    phase_in = jnp.arctan2(sn_im, sn_re)
    mag = jnp.tanh(mag_mask) * mag_in
    phase = phase_mask + phase_in
    return jnp.concatenate(
        [(mag * jnp.cos(phase))[..., None], (mag * jnp.sin(phase))[..., None]],
        axis=-1,
    )


if __name__ == "__main__":
    key = jax.random.PRNGKey(0)
    k1, k2 = jax.random.split(key)
    # [B, C, F, T, 2] complex-as-last-dim spectrograms.
    B, C, F, T = 2, 4, 16, 16
    sound_with_noise = jax.random.normal(k1, (B, C, F, T, 2), dtype=jnp.float32)
    unet_out = jax.random.normal(k2, (B, C, F, T, 2), dtype=jnp.float32)

    out = complex_mask_on_polar_coo(sound_with_noise, unet_out)
    out = jax.block_until_ready(out)

    ref = _reference(sound_with_noise, unet_out)
    assert out.shape == (B, C, F, T, 2)
    assert jnp.allclose(out, ref, atol=1e-5, rtol=1e-5), "mismatch vs reference"

    # Exercise the u == 0 guard (reference returns 0 there as tanh(0) == 0).
    un_zero = unet_out.at[0, 0].set(0.0)
    out_z = jax.block_until_ready(
        complex_mask_on_polar_coo(sound_with_noise, un_zero))
    assert jnp.allclose(out_z, _reference(sound_with_noise, un_zero),
                        atol=1e-5, rtol=1e-5), "mismatch at u == 0"

    print("KERNEL_OK")
</pallas_src>

<mosaic_0001>
module attributes {stable_mosaic.version = 11 : i64} {
  func.func @_complex_mask_kernel(%arg0: i32, %arg1: memref<2x8x512xf32, #tpu.memory_space<vmem>>, %arg2: memref<2x8x512xf32, #tpu.memory_space<vmem>>, %arg3: memref<2x8x512xf32, #tpu.memory_space<vmem>>) attributes {dimension_semantics = [#tpu.dimension_semantics<parallel>], iteration_bounds = array<i64: 1>, scalar_prefetch = 0 : i64, scratch_operands = 0 : i64, tpu.core_type = #tpu.core_type<tc>, window_params = [{transform_indices = @transform_0, window_bounds = array<i64: 2, 8, 512>}, {transform_indices = @transform_1, window_bounds = array<i64: 2, 8, 512>}, {transform_indices = @transform_2, window_bounds = array<i64: 2, 8, 512>}]} {
    %c0 = arith.constant 0 : index
    %c0_0 = arith.constant 0 : index
    %c0_1 = arith.constant 0 : index
    %0 = vector.load %arg1[%c0, %c0_0, %c0_1] : memref<2x8x512xf32, #tpu.memory_space<vmem>>, vector<1x8x512xf32>
    %1 = vector.shape_cast %0 : vector<1x8x512xf32> to vector<8x512xf32>
    %c1 = arith.constant 1 : index
    %c0_2 = arith.constant 0 : index
    %c0_3 = arith.constant 0 : index
    %2 = vector.load %arg1[%c1, %c0_2, %c0_3] : memref<2x8x512xf32, #tpu.memory_space<vmem>>, vector<1x8x512xf32>
    %3 = vector.shape_cast %2 : vector<1x8x512xf32> to vector<8x512xf32>
    %c0_4 = arith.constant 0 : index
    %c0_5 = arith.constant 0 : index
    %c0_6 = arith.constant 0 : index
    %4 = vector.load %arg2[%c0_4, %c0_5, %c0_6] : memref<2x8x512xf32, #tpu.memory_space<vmem>>, vector<1x8x512xf32>
    %5 = vector.shape_cast %4 : vector<1x8x512xf32> to vector<8x512xf32>
    %c1_7 = arith.constant 1 : index
    %c0_8 = arith.constant 0 : index
    %c0_9 = arith.constant 0 : index
    %6 = vector.load %arg2[%c1_7, %c0_8, %c0_9] : memref<2x8x512xf32, #tpu.memory_space<vmem>>, vector<1x8x512xf32>
    %7 = vector.shape_cast %6 : vector<1x8x512xf32> to vector<8x512xf32>
    %8 = arith.mulf %5, %5 : vector<8x512xf32>
    %9 = arith.mulf %7, %7 : vector<8x512xf32>
    %10 = arith.addf %8, %9 : vector<8x512xf32>
    %cst = arith.constant 0.000000e+00 : f32
    %11 = vector.broadcast %cst : f32 to vector<8x512xf32>
    %12 = arith.cmpf ogt, %10, %11 : vector<8x512xf32>
    %cst_10 = arith.constant 1.000000e+00 : f32
    %13 = vector.broadcast %cst_10 : f32 to vector<8x512xf32>
    %14 = arith.select %12, %10, %13 : vector<8x512xi1>, vector<8x512xf32>
    %15 = math.rsqrt %14 : vector<8x512xf32>
    %16 = arith.mulf %10, %15 : vector<8x512xf32>
    %17 = math.tanh %16 : vector<8x512xf32>
    %18 = arith.mulf %17, %15 : vector<8x512xf32>
    %19 = arith.mulf %5, %1 : vector<8x512xf32>
    %20 = arith.mulf %7, %3 : vector<8x512xf32>
    %21 = arith.subf %19, %20 : vector<8x512xf32>
    %22 = arith.mulf %18, %21 : vector<8x512xf32>
    %c0_11 = arith.constant 0 : index
    %c0_12 = arith.constant 0 : index
    %c0_13 = arith.constant 0 : index
    %23 = vector.load %arg3[%c0_11, %c0_12, %c0_13] : memref<2x8x512xf32, #tpu.memory_space<vmem>>, vector<1x8x512xf32>
    %24 = vector.shape_cast %23 : vector<1x8x512xf32> to vector<8x512xf32>
    %25 = vector.shape_cast %22 : vector<8x512xf32> to vector<1x8x512xf32>
    tpu.vector_store %arg3[%c0_11, %c0_12, %c0_13], %25 {strides = array<i32>} : memref<2x8x512xf32, #tpu.memory_space<vmem>>, vector<1x8x512xf32>,
    %26 = arith.mulf %5, %3 : vector<8x512xf32>
    %27 = arith.mulf %7, %1 : vector<8x512xf32>
    %28 = arith.addf %26, %27 : vector<8x512xf32>
    %29 = arith.mulf %18, %28 : vector<8x512xf32>
    %c1_14 = arith.constant 1 : index
    %c0_15 = arith.constant 0 : index
    %c0_16 = arith.constant 0 : index
    %30 = vector.load %arg3[%c1_14, %c0_15, %c0_16] : memref<2x8x512xf32, #tpu.memory_space<vmem>>, vector<1x8x512xf32>
    %31 = vector.shape_cast %30 : vector<1x8x512xf32> to vector<8x512xf32>
    %32 = vector.shape_cast %29 : vector<8x512xf32> to vector<1x8x512xf32>
    tpu.vector_store %arg3[%c1_14, %c0_15, %c0_16], %32 {strides = array<i32>} : memref<2x8x512xf32, #tpu.memory_space<vmem>>, vector<1x8x512xf32>,
    return
  }
  func.func @transform_0(%arg0: i32) -> (i32, i32, i32) {
    %c0_i32 = arith.constant 0 : i32
    %c0_i32_0 = arith.constant 0 : i32
    %c0_i32_1 = arith.constant 0 : i32
    return %c0_i32, %arg0, %c0_i32_0 : i32, i32, i32
  }
  func.func @transform_1(%arg0: i32) -> (i32, i32, i32) {
    %c0_i32 = arith.constant 0 : i32
    %c0_i32_0 = arith.constant 0 : i32
    %c0_i32_1 = arith.constant 0 : i32
    return %c0_i32, %arg0, %c0_i32_0 : i32, i32, i32
  }
  func.func @transform_2(%arg0: i32) -> (i32, i32, i32) {
    %c0_i32 = arith.constant 0 : i32
    %c0_i32_0 = arith.constant 0 : i32
    %c0_i32_1 = arith.constant 0 : i32
    return %c0_i32, %arg0, %c0_i32_0 : i32, i32, i32
  }
}

</mosaic_0001>

<llo_original>
// kernel: tpu_custom_call.1
$region0: #{tpu_custom_call.1}
  #allocation0 [shape = 'u32[]', space=smem, size = 0x4, offset = 0x4, fixed_abs, tag = 'smem constant byte address 0x4 - core index']
  #allocation1 [shape = 'u32[144,128]{1,0:T(1,128)}', space=vmem, size = 0x12000, scoped, tag = 'internal scratch']
  %s0 = inlined_call_operand.hbm [shape: f32[2,8,512], index: 0, kind: input, shape index: {}]
  %s1 = inlined_call_operand.hbm [shape: f32[2,8,512], index: 1, kind: input, shape index: {}]
  %s2 = inlined_call_operand.hbm [shape: f32[2,8,512], index: 2, kind: output, shape index: {}]
  %s3 = sld [smem:[#allocation0]]
  $region26: #{tpu_custom_call.1} parent=0
    _
  %s5 = ssub.s32 1, %s3
  %s6 = scalar_select 0, %s5, %s3
  $region1: #{tpu_custom_call.1} parent=0
    #allocation2 [shape = 'u8[32768]{0}', space=vmem, size = 0x8000, scoped, tag = 'input window, operand 0, single buffered']
    #allocation3 [shape = 's32[1]{0}', space=sflag, size = 0x4, scoped, tag = 'scoped memory for tpu_custom_call.1']
    #allocation4 [shape = 's32[1]{0}', space=sflag, size = 0x4, scoped, tag = 'scoped memory for tpu_custom_call.1']
    #allocation5 [shape = 'u8[32768]{0}', space=vmem, size = 0x8000, scoped, tag = 'input window, operand 1, single buffered']
    #allocation6 [shape = 's32[1]{0}', space=sflag, size = 0x4, scoped, tag = 'scoped memory for tpu_custom_call.1']
    #allocation7 [shape = 'u8[32768]{0}', space=vmem, size = 0x8000, scoped, tag = 'output window, operand 0, single buffered']
    %7 = vsyncpa [#allocation3], 0
    %8 = vsyncpa [#allocation6], 0
    %9 = vsyncpa [#allocation4], 0
    // Predicated region
    $region2: #{tpu_custom_call.1} parent=1 // pred_check
      _
    $region3: #{tpu_custom_call.1} parent=1 // pred_check_branch
      %11 = sbr.rel (0) target = $region5
    $region4: #{tpu_custom_call.1} parent=1 // pred_region
      %s13 = ssub.s32 1024, 1024
      %14 = vsyncadd [#allocation3], %s13
      %s15 = sshll.u32 [#allocation2], 4
      %s16 = int_to_ptr.vmem [resolvable:$true] %s15
      %21 = dma.hbm_to_vmem [thread:$0]  %s0, 1024, %s16, [#allocation3], 512, 512, 32
    $region5: #{tpu_custom_call.1} parent=1 // pred_fallthru
      _
    // Predicated region
    $region6: #{tpu_custom_call.1} parent=1 // pred_check
      _
    $region7: #{tpu_custom_call.1} parent=1 // pred_check_branch
      %23 = sbr.rel (0) target = $region9
    $region8: #{tpu_custom_call.1} parent=1 // pred_region
      %s25 = ssub.s32 1024, 1024
      %26 = vsyncadd [#allocation6], %s25
      %s27 = sshll.u32 [#allocation5], 4
      %s28 = int_to_ptr.vmem [resolvable:$true] %s27
      %33 = dma.hbm_to_vmem [thread:$0]  %s1, 1024, %s28, [#allocation6], 512, 512, 32
    $region9: #{tpu_custom_call.1} parent=1 // pred_fallthru
      _
    // Predicated region
    $region10: #{tpu_custom_call.1} parent=1 // pred_check
      _
    $region11: #{tpu_custom_call.1} parent=1 // pred_check_branch
      %35 = sbr.rel (0) target = $region13
    $region12: #{tpu_custom_call.1} parent=1 // pred_region
      %36 = dma.done [#allocation3], 1024
    $region13: #{tpu_custom_call.1} parent=1 // pred_fallthru
      _
    // Predicated region
    $region14: #{tpu_custom_call.1} parent=1 // pred_check
      _
    $region15: #{tpu_custom_call.1} parent=1 // pred_check_branch
      %38 = sbr.rel (0) target = $region17
    $region16: #{tpu_custom_call.1} parent=1 // pred_region
      %39 = dma.done [#allocation6], 1024
    $region17: #{tpu_custom_call.1} parent=1 // pred_fallthru
      _
    %v40 = vld [vmem:[#allocation2] sm:$0xff]
    %v41 = vld [vmem:[#allocation2 + $0x8] sm:$0xff]
    %v42 = vld [vmem:[#allocation2 + $0x10] sm:$0xff]
    %v43 = vld [vmem:[#allocation2 + $0x18] sm:$0xff]
    %s44 = scalar_lea.vmem [#allocation2], 32
    %v45 = vld [vmem:[%s44] sm:$0xff]
    %v46 = vld [vmem:[%s44 + $0x8] sm:$0xff]
    %v47 = vld [vmem:[%s44 + $0x10] sm:$0xff]
    %v48 = vld [vmem:[%s44 + $0x18] sm:$0xff]
    %v49 = vld [vmem:[#allocation5] sm:$0xff]
    %v50 = vld [vmem:[#allocation5 + $0x8] sm:$0xff]
    %v51 = vld [vmem:[#allocation5 + $0x10] sm:$0xff]
    %v52 = vld [vmem:[#allocation5 + $0x18] sm:$0xff]
    %s53 = scalar_lea.vmem [#allocation5], 32
    %v54 = vld [vmem:[%s53] sm:$0xff]
    %v55 = vld [vmem:[%s53 + $0x8] sm:$0xff]
    %v56 = vld [vmem:[%s53 + $0x10] sm:$0xff]
    %v57 = vld [vmem:[%s53 + $0x18] sm:$0xff]
    %v58 = vmul.f32 %v49, %v49
    %v59 = vmul.f32 %v50, %v50
    %v60 = vmul.f32 %v51, %v51
    %v61 = vmul.f32 %v52, %v52
    %v62 = vmul.f32 %v54, %v54
    %v63 = vmul.f32 %v55, %v55
    %v64 = vmul.f32 %v56, %v56
    %v65 = vmul.f32 %v57, %v57
    %v66 = vadd.f32 %v58, %v62
    %v67 = vadd.f32 %v59, %v63
    %v68 = vadd.f32 %v60, %v64
    %v69 = vadd.f32 %v61, %v65
    %vm70 = vcmp.gt.f32.partialorder %v66, 0.0
    %vm71 = vcmp.gt.f32.partialorder %v67, 0.0
    %vm72 = vcmp.gt.f32.partialorder %v68, 0.0
    %vm73 = vcmp.gt.f32.partialorder %v69, 0.0
    %v74 = vsel %vm70, %v66, 1.0
    %v75 = vsel %vm71, %v67, 1.0
    %v76 = vsel %vm72, %v68, 1.0
    %v77 = vsel %vm73, %v69, 1.0
    %v78 = vrsqrt.pop %v74
    %v79 = vrsqrt.pop %v75
    %v80 = vrsqrt.pop %v76
    %v81 = vrsqrt.pop %v77
    %v82 = vmul.f32 %v66, %v78
    %v83 = vmul.f32 %v67, %v79
    %v84 = vmul.f32 %v68, %v80
    %v85 = vmul.f32 %v69, %v81
    %v86 = vtanh.pop %v82
    %v87 = vtanh.pop %v83
    %v88 = vtanh.pop %v84
    %v89 = vtanh.pop %v85
    %v90 = vmul.f32 %v86, %v78
    %v91 = vmul.f32 %v87, %v79
    %v92 = vmul.f32 %v88, %v80
    %v93 = vmul.f32 %v89, %v81
    %v94 = vmul.f32 %v49, %v40
    %v95 = vmul.f32 %v50, %v41
    %v96 = vmul.f32 %v51, %v42
    %v97 = vmul.f32 %v52, %v43
    %v98 = vmul.f32 %v54, %v45
    %v99 = vmul.f32 %v55, %v46
    %v100 = vmul.f32 %v56, %v47
    %v101 = vmul.f32 %v57, %v48
    %v102 = vsub.f32 %v94, %v98
    %v103 = vsub.f32 %v95, %v99
    %v104 = vsub.f32 %v96, %v100
    %v105 = vsub.f32 %v97, %v101
    %v106 = vmul.f32 %v90, %v102
    %v107 = vmul.f32 %v91, %v103
    %v108 = vmul.f32 %v92, %v104
    %v109 = vmul.f32 %v93, %v105
    %110 = vst [vmem:[#allocation7] sm:$0xff] %v106
    %111 = vst [vmem:[#allocation7 + $0x8] sm:$0xff] %v107
    %112 = vst [vmem:[#allocation7 + $0x10] sm:$0xff] %v108
    %113 = vst [vmem:[#allocation7 + $0x18] sm:$0xff] %v109
    %v114 = vmul.f32 %v49, %v45
    %v115 = vmul.f32 %v50, %v46
    %v116 = vmul.f32 %v51, %v47
    %v117 = vmul.f32 %v52, %v48
    %v118 = vmul.f32 %v54, %v40
    %v119 = vmul.f32 %v55, %v41
    %v120 = vmul.f32 %v56, %v42
    %v121 = vmul.f32 %v57, %v43
    %v122 = vadd.f32 %v114, %v118
    %v123 = vadd.f32 %v115, %v119
    %v124 = vadd.f32 %v116, %v120
    %v125 = vadd.f32 %v117, %v121
    %v126 = vmul.f32 %v90, %v122
    %v127 = vmul.f32 %v91, %v123
    %v128 = vmul.f32 %v92, %v124
    %v129 = vmul.f32 %v93, %v125
    %s130 = scalar_lea.vmem [#allocation7], 32
    %131 = vst [vmem:[%s130] sm:$0xff] %v126
    %132 = vst [vmem:[%s130 + $0x8] sm:$0xff] %v127
    %133 = vst [vmem:[%s130 + $0x10] sm:$0xff] %v128
    %134 = vst [vmem:[%s130 + $0x18] sm:$0xff] %v129
    // Predicated region
    $region18: #{tpu_custom_call.1} parent=1 // pred_check
      _
    $region19: #{tpu_custom_call.1} parent=1 // pred_check_branch
      %136 = sbr.rel (0) target = $region21
    $region20: #{tpu_custom_call.1} parent=1 // pred_region
      %s138 = ssub.s32 1024, 1024
      %139 = vsyncadd [#allocation4], %s138
      %s140 = sshll.u32 [#allocation7], 4
      %s141 = int_to_ptr.vmem [resolvable:$true] %s140
      %146 = dma.vmem_to_hbm [thread:$0]  %s141, 1024, %s2, [#allocation4], 512, 512, 32
    $region21: #{tpu_custom_call.1} parent=1 // pred_fallthru
      _
    // Predicated region
    $region22: #{tpu_custom_call.1} parent=1 // pred_check
      _
    $region23: #{tpu_custom_call.1} parent=1 // pred_check_branch
      %148 = sbr.rel (0) target = $region25
    $region24: #{tpu_custom_call.1} parent=1 // pred_region
      %149 = dma.done [#allocation4], 1024
    $region25: #{tpu_custom_call.1} parent=1 // pred_fallthru
      _
    %150 = vsyncpa [#allocation3], 1
    %151 = vsyncpa [#allocation6], 1
    %152 = vsyncpa [#allocation4], 1

</llo_original>
